<compile_context>
chip_gen: v6e
topology: v6e:2x2x1
jax: 0.10.0
libtpu: 0.0.40
codegen_flags: <defaults>
</compile_context>

<pallas_src>
import functools

import numpy as np
import jax
import jax.numpy as jnp
from jax.experimental import pallas as pl
from jax.experimental.pallas import tpu as pltpu

LANE_CANDIDATES = (512, 256, 128)   # lane-dense last dims (multiples of 128)
_MIN_SPLIT_ROWS = 256               # below this a single full block is fine
_MIN_GRID_STEPS = 4                 # >= 2 steps per TC on v7x; pipelined elsewhere
_MAX_BLOCK_ROWS = 8192              # cap on block rows (8192 x 512 x 4B = 16 MiB f32)


def _round_up(x: int, m: int) -> int:
    return ((x + m - 1) // m) * m


def _vmem_budget_bytes() -> int:
    """Explicit scoped-VMEM limit: half of physical VMEM, capped at 64 MiB."""
    try:
        cap = int(pltpu.get_tpu_info().vmem_capacity_bytes)
    except Exception:
        cap = 64 << 20  # conservative default (matches v7x; safe on all gens)
    return min(cap // 2, 64 << 20)


def _choose_tiling(rows: int, lane: int, vmem_limit: int):
    """Pick (block_rows, grid_steps) for a (rows, lane) f32 -> bool kernel."""
    if rows <= _MIN_SPLIT_ROWS:
        # Tiny input: one block equal to the full array (no (8,128) constraint,
        # negligible absolute cost).
        return rows, 1
    # Per-step VMEM footprint: double-buffered f32 input + bool output
    #   = 2 * block_rows * lane * (4 + 1) bytes.  Use ~3/4 of the limit.
    budget = (vmem_limit * 3) // 4
    max_rows = budget // (2 * lane * 5)
    max_rows = max(32, (max_rows // 32) * 32)
    max_rows = min(max_rows, _MAX_BLOCK_ROWS)
    # Force at least _MIN_GRID_STEPS blocks so DMA pipelining / both v7x TCs engage.
    block_rows = min(max_rows, max(32, _round_up(pl.cdiv(rows, _MIN_GRID_STEPS), 32)))
    return block_rows, pl.cdiv(rows, block_rows)


def _singleton_mf_kernel(x_ref, o_ref, *, value):
    # Single VPU compare per vreg — the kernel is strictly HBM-bandwidth bound.
    o_ref[...] = x_ref[...] == jnp.asarray(value, dtype=x_ref.dtype)


def singleton_mf(x: jax.Array, value: float) -> jax.Array:
    """Pallas equivalent of SingletonMf.forward: returns (x == value) as bool."""
    orig_shape = x.shape
    n = x.size
    if n == 0:
        return jnp.zeros(orig_shape, dtype=jnp.bool_)

    # PyTorch promotes `int_tensor == 0.5` (result: all False); casting the
    # value into an integer/bool dtype inside the kernel would be wrong.
    if not jnp.issubdtype(x.dtype, jnp.floating):
        v_cast = np.asarray(value).astype(np.dtype(x.dtype))
        if float(v_cast) != float(value):
            return jnp.zeros(orig_shape, dtype=jnp.bool_)
        value = v_cast  # exactly representable in x.dtype

    lane = next((l for l in LANE_CANDIDATES if n % l == 0), None)
    if lane is None:
        # TODO(synk): fold this rare case (element count not a multiple of 128)
        # into the pallas_call via a ragged 1-D last block.  A single fused XLA
        # elementwise compare is already HBM-bound (~5N bytes), so this avoids
        # the slice+concatenate double-traffic of the previous version.
        return (x == jnp.asarray(value, dtype=x.dtype)).reshape(orig_shape)

    rows = n // lane
    x2d = x.reshape(rows, lane)  # metadata-only for a contiguous input

    vmem_limit = _vmem_budget_bytes()
    block_rows, grid_steps = _choose_tiling(rows, lane, vmem_limit)

    out2d = pl.pallas_call(
        functools.partial(_singleton_mf_kernel, value=value),
        out_shape=jax.ShapeDtypeStruct((rows, lane), jnp.bool_),
        grid=(grid_steps,),
        in_specs=[pl.BlockSpec((block_rows, lane), lambda i: (i, 0))],
        out_specs=pl.BlockSpec((block_rows, lane), lambda i: (i, 0)),
        compiler_params=pltpu.CompilerParams(
            dimension_semantics=("parallel",),
            vmem_limit_bytes=vmem_limit,
        ),
    )(x2d)
    return out2d.reshape(orig_shape)


if __name__ == "__main__":
    key = jax.random.PRNGKey(0)
    value = 0.5

    # --- Primary shape implied by the module: (B, C, H, W) = (2, 4, 16, 16) ---
    B, C, H, W = 2, 4, 16, 16
    k_x, k_mask, k_x2, k_mask2 = jax.random.split(key, 4)
    x = jax.random.normal(k_x, (B, C, H, W), dtype=jnp.float32)
    mask = jax.random.bernoulli(k_mask, p=0.25, shape=(B, C, H, W))
    x = jnp.where(mask, jnp.float32(value), x)

    out = jax.block_until_ready(singleton_mf(x, value))
    ref = x == jnp.float32(value)
    assert out.shape == x.shape
    assert out.dtype == jnp.bool_
    assert bool(jnp.all(out == ref))

    # --- Multi-block path with a ragged final row-block (rows=300, lane=512) ---
    x_big = jax.random.normal(k_x2, (300, 512), dtype=jnp.float32)
    mask_big = jax.random.bernoulli(k_mask2, p=0.1, shape=x_big.shape)
    x_big = jnp.where(mask_big, jnp.float32(value), x_big)
    out_big = jax.block_until_ready(singleton_mf(x_big, value))
    assert bool(jnp.all(out_big == (x_big == jnp.float32(value))))

    # --- Element count not a multiple of 128 (single fused XLA fallback) ---
    x_odd = jnp.linspace(0.0, 1.0, 91, dtype=jnp.float32).reshape(7, 13)
    out_odd = jax.block_until_ready(singleton_mf(x_odd, 0.0))
    assert bool(out_odd[0, 0]) and int(jnp.sum(out_odd)) == 1

    # --- Integer input: promotion semantics for fractional / integral values ---
    x_int = jnp.arange(256, dtype=jnp.int32).reshape(2, 128)
    assert not bool(jnp.any(jax.block_until_ready(singleton_mf(x_int, 0.5))))
    assert int(jnp.sum(jax.block_until_ready(singleton_mf(x_int, 3.0)))) == 1

    print("KERNEL_OK")
</pallas_src>

<mosaic_0001>
module attributes {stable_mosaic.version = 11 : i64} {
  func.func @_singleton_mf_kernel(%arg0: i32, %arg1: memref<4x512xf32, #tpu.memory_space<vmem>>, %arg2: memref<4x512xi32, #tpu.memory_space<vmem>>) attributes {dimension_semantics = [#tpu.dimension_semantics<parallel>], iteration_bounds = array<i64: 1>, scalar_prefetch = 0 : i64, scratch_operands = 0 : i64, tpu.core_type = #tpu.core_type<tc>, window_params = [{transform_indices = @transform_0, window_bounds = array<i64: 4, 512>}, {transform_indices = @transform_1, window_bounds = array<i64: 4, 512>}]} {
    %c0 = arith.constant 0 : index
    %c0_0 = arith.constant 0 : index
    %0 = vector.load %arg1[%c0, %c0_0] : memref<4x512xf32, #tpu.memory_space<vmem>>, vector<4x512xf32>
    %cst = arith.constant 5.000000e-01 : f32
    %1 = vector.broadcast %cst : f32 to vector<4x512xf32>
    %2 = arith.cmpf oeq, %0, %1 : vector<4x512xf32>
    %c0_1 = arith.constant 0 : index
    %c0_2 = arith.constant 0 : index
    %3 = vector.load %arg2[%c0_1, %c0_2] : memref<4x512xi32, #tpu.memory_space<vmem>>, vector<4x512xi32>
    %4 = arith.extui %2 : vector<4x512xi1> to vector<4x512xi32>
    %cst_3 = arith.constant dense<0> : vector<4x512xi32>
    %5 = arith.cmpi ne, %3, %cst_3 : vector<4x512xi32>
    tpu.vector_store %arg2[%c0_1, %c0_2], %4 {strides = array<i32>} : memref<4x512xi32, #tpu.memory_space<vmem>>, vector<4x512xi32>,
    return
  }
  func.func @transform_0(%arg0: i32) -> (i32, i32) {
    %c0_i32 = arith.constant 0 : i32
    %c0_i32_0 = arith.constant 0 : i32
    return %arg0, %c0_i32 : i32, i32
  }
  func.func @transform_1(%arg0: i32) -> (i32, i32) {
    %c0_i32 = arith.constant 0 : i32
    %c0_i32_0 = arith.constant 0 : i32
    return %arg0, %c0_i32 : i32, i32
  }
}

</mosaic_0001>

<llo_original>
// kernel: tpu_custom_call.1
$region0: #{tpu_custom_call.1}
  #allocation0 [shape = 'u32[]', space=smem, size = 0x4, offset = 0x4, fixed_abs, tag = 'smem constant byte address 0x4 - core index']
  #allocation1 [shape = 'u32[144,128]{1,0:T(1,128)}', space=vmem, size = 0x12000, scoped, tag = 'internal scratch']
  %s0 = inlined_call_operand.hbm [shape: f32[4,512], index: 0, kind: input, shape index: {}]
  %s1 = inlined_call_operand.vmem [shape: s32[4,512], index: 1, kind: output, shape index: {}]
  %s2 = sld [smem:[#allocation0]]
  $region18: #{tpu_custom_call.1} parent=0
    _
  %s4 = ssub.s32 1, %s2
  %s5 = scalar_select 0, %s4, %s2
  $region1: #{tpu_custom_call.1} parent=0
    #allocation2 [shape = 'u8[8192]{0}', space=vmem, size = 0x2000, scoped, tag = 'input window, operand 0, single buffered']
    #allocation3 [shape = 's32[1]{0}', space=sflag, size = 0x4, scoped, tag = 'scoped memory for tpu_custom_call.1']
    %6 = vsyncpa [#allocation3], 0
    // Predicated region
    $region2: #{tpu_custom_call.1} parent=1 // pred_check
      _
    $region3: #{tpu_custom_call.1} parent=1 // pred_check_branch
      %8 = sbr.rel (0) target = $region5
    $region4: #{tpu_custom_call.1} parent=1 // pred_region
      %s10 = ssub.s32 256, 256
      %11 = vsyncadd [#allocation3], %s10
      %s13 = sshll.u32 [#allocation2], 4
      %s14 = int_to_ptr.vmem [resolvable:$true] %s13
      %16 = dma.hbm_to_vmem [thread:$0]  %s0, 256, %s14, [#allocation3]
    $region5: #{tpu_custom_call.1} parent=1 // pred_fallthru
      _
    // Predicated region
    $region6: #{tpu_custom_call.1} parent=1 // pred_check
      _
    $region7: #{tpu_custom_call.1} parent=1 // pred_check_branch
      %18 = sbr.rel (0) target = $region9
    $region8: #{tpu_custom_call.1} parent=1 // pred_region
      %19 = dma.done [#allocation3], 256
    $region9: #{tpu_custom_call.1} parent=1 // pred_fallthru
      _
    %v20 = vld [vmem:[#allocation2] sm:$0xff]
    %v21 = vld [vmem:[#allocation2 + $0x8] sm:$0xff]
    %vm22 = vcmp.eq.f32.partialorder %v20, 0.5
    %vm23 = vcmp.eq.f32.partialorder %v21, 0.5
    %v24 = vsel %vm22, 1, 0
    %v25 = vsel %vm23, 1, 0
    %26 = vst [vmem:[%s1] sm:$0xff] %v24
    %27 = vst [vmem:[%s1 + $0x8] sm:$0xff] %v25
    // Predicated region
    $region10: #{tpu_custom_call.1} parent=1 // pred_check
      _
    $region11: #{tpu_custom_call.1} parent=1 // pred_check_branch
      %29 = sbr.rel (0) target = $region13
    $region12: #{tpu_custom_call.1} parent=1 // pred_region
      _
    $region13: #{tpu_custom_call.1} parent=1 // pred_fallthru
      _
    // Predicated region
    $region14: #{tpu_custom_call.1} parent=1 // pred_check
      _
    $region15: #{tpu_custom_call.1} parent=1 // pred_check_branch
      %31 = sbr.rel (0) target = $region17
    $region16: #{tpu_custom_call.1} parent=1 // pred_region
      _
    $region17: #{tpu_custom_call.1} parent=1 // pred_fallthru
      _
    %32 = vsyncpa [#allocation3], 1

</llo_original>
